<compile_context>
chip_gen: v7x
topology: tpu7x:2x2x1
jax: 0.10.0
libtpu: 0.0.40
codegen_flags: <defaults>
</compile_context>

<pallas_src>
import math

import jax
import jax.numpy as jnp
from jax.experimental import pallas as pl
from jax.experimental.pallas import tpu as pltpu

_INV_SQRT2 = 1.0 / math.sqrt(2.0)

# Lane-dense column candidates (all multiples of 128); first divisor of n wins.
_COL_CANDIDATES = (1024, 512, 384, 256, 128)
# Target block size in bytes (per buffer). ~4 MiB keeps double-buffered
# in+out at ~16 MiB, inside the 32 MiB scoped-VMEM limit requested below.
_TARGET_BLOCK_BYTES = 4 * 1024 * 1024
_VMEM_LIMIT_BYTES = 32 * 1024 * 1024


def _gelu_kernel(x_ref, o_ref):
    x = x_ref[...]
    half = jnp.asarray(0.5, dtype=x.dtype)
    one = jnp.asarray(1.0, dtype=x.dtype)
    inv_sqrt2 = jnp.asarray(_INV_SQRT2, dtype=x.dtype)
    # Exact (erf-based) GeLU: x * 0.5 * (1 + erf(x / sqrt(2)))
    o_ref[...] = x * half * (one + jax.lax.erf(x * inv_sqrt2))


def _round_up(n, m):
    return ((n + m - 1) // m) * m


def _pick_row_tile(rows, cols, itemsize, sub):
    """Pick the row-tile size (multiple of the sublane packing where possible)."""
    if rows <= sub:
        # Tiny slab: single block equal to the full row extent (valid per the
        # "block dim equals full array dim" rule); cols is already lane-dense.
        return rows
    # Size the block by bytes so bf16 gets 2x the rows of f32.
    tr = max(sub, (_TARGET_BLOCK_BYTES // (cols * itemsize)) // sub * sub)
    # Keep the block inside the array (last grid block may still be partial).
    tr = min(tr, (rows // sub) * sub)
    # Megacore (v7x): ensure the "parallel" grid has >= 2 steps when possible.
    while pl.cdiv(rows, tr) < 2 and tr > sub:
        tr = max(sub, _round_up(tr // 2, sub))
    return tr


def gelu_pallas(x, *, donate=False):
    """Exact GeLU elementwise via a Pallas TPU kernel.

    Any-rank input.  Fast path (n % 128 == 0): copy-free reshape to a
    lane-dense [rows, cols] slab — no padding, no tail slice.  Rare path:
    pad the flat array by < 128 zeros to the next lane multiple.
    """
    orig_shape = x.shape
    orig_dtype = x.dtype
    n = x.size
    if n == 0:
        return x

    itemsize = jnp.dtype(orig_dtype).itemsize
    # Sublane packing granularity (f32:8, bf16:16, int8/fp8:32).
    sub = {4: 8, 2: 16, 1: 32}.get(itemsize, 8)

    cols = None
    for c in _COL_CANDIDATES:
        if n % c == 0:
            cols = c
            break

    if cols is not None:
        # Fast path: free reshape, no pad, no tail slice.
        rows = n // cols
        x2 = x.reshape(rows, cols)
        padded = False
    else:
        # Rare path: n is not a multiple of 128; pad by < 128 zeros.
        cols = 128
        rows = pl.cdiv(n, cols)
        xf = jnp.pad(x.reshape(-1), (0, rows * cols - n))  # GeLU(0) == 0
        x2 = xf.reshape(rows, cols)
        padded = True

    tr = _pick_row_tile(rows, cols, itemsize, sub)
    grid = (pl.cdiv(rows, tr),)

    n_proc = rows * cols
    cost = pl.CostEstimate(
        flops=20 * n_proc,                    # erf rational poly + mul/adds
        transcendentals=0,
        bytes_accessed=2 * n_proc * itemsize,  # read + write
    )

    out = pl.pallas_call(
        _gelu_kernel,
        out_shape=jax.ShapeDtypeStruct((rows, cols), orig_dtype),
        grid_spec=pltpu.PrefetchScalarGridSpec(
            num_scalar_prefetch=0,
            grid=grid,
            in_specs=[pl.BlockSpec((tr, cols), lambda i: (i, 0))],
            out_specs=pl.BlockSpec((tr, cols), lambda i: (i, 0)),
        ),
        compiler_params=pltpu.CompilerParams(
            dimension_semantics=("parallel",),
            vmem_limit_bytes=_VMEM_LIMIT_BYTES,
        ),
        cost_estimate=cost,
        # When the caller donates x, reuse its HBM buffer for the output.
        input_output_aliases=({0: 0} if donate else {}),
    )(x2)

    if padded:
        return out.reshape(-1)[:n].reshape(orig_shape)
    return out.reshape(orig_shape)


if __name__ == "__main__":
    def gelu_ref(x):
        return x * 0.5 * (1.0 + jax.lax.erf(x / math.sqrt(2.0)))

    key = jax.random.PRNGKey(0)
    k0, k1, k2 = jax.random.split(key, 3)

    # Small transformer-activation shape: [batch, seq, hidden].  n = 512 ->
    # fast path, single-row lane-dense slab.
    x = jax.random.normal(k0, (2, 8, 32), dtype=jnp.float32)
    y = jax.block_until_ready(gelu_pallas(x))
    assert y.shape == x.shape and y.dtype == x.dtype
    assert jnp.allclose(y, gelu_ref(x), atol=1e-5, rtol=1e-5)

    # Fast path with multiple row tiles (exercises the non-dividing grid and
    # the >=2-step megacore split), hidden=768.
    x2 = jax.random.normal(k1, (2, 64, 768), dtype=jnp.float32)
    y2 = jax.block_until_ready(gelu_pallas(x2))
    assert jnp.allclose(y2, gelu_ref(x2), atol=1e-5, rtol=1e-5)

    # Ragged shape: n not a multiple of 128 -> rare padded path (< 128 zeros).
    x3 = jax.random.normal(k2, (3, 17, 100), dtype=jnp.float32)
    y3 = jax.block_until_ready(gelu_pallas(x3))
    assert jnp.allclose(y3, gelu_ref(x3), atol=1e-5, rtol=1e-5)

    print("KERNEL_OK")
</pallas_src>

<mosaic_0001>
module attributes {stable_mosaic.version = 11 : i64} {
  func.func @_gelu_kernel(%arg0: i32, %arg1: memref<1x512xf32, #tpu.memory_space<vmem>>, %arg2: memref<1x512xf32, #tpu.memory_space<vmem>>) attributes {dimension_semantics = [#tpu.dimension_semantics<parallel>], iteration_bounds = array<i64: 1>, scalar_prefetch = 0 : i64, scratch_operands = 0 : i64, tpu.core_type = #tpu.core_type<tc>, window_params = [{transform_indices = @transform_0, window_bounds = array<i64: 1, 512>}, {transform_indices = @transform_1, window_bounds = array<i64: 1, 512>}]} {
    %c0 = arith.constant 0 : index
    %c0_0 = arith.constant 0 : index
    %0 = vector.load %arg1[%c0, %c0_0] : memref<1x512xf32, #tpu.memory_space<vmem>>, vector<1x512xf32>
    %cst = arith.constant 5.000000e-01 : f32
    %1 = vector.broadcast %cst : f32 to vector<1x512xf32>
    %2 = arith.mulf %0, %1 : vector<1x512xf32>
    %cst_1 = arith.constant 0.707106769 : f32
    %3 = vector.broadcast %cst_1 : f32 to vector<1x512xf32>
    %4 = arith.mulf %0, %3 : vector<1x512xf32>
    %5 = math.erf %4 : vector<1x512xf32>
    %cst_2 = arith.constant 1.000000e+00 : f32
    %6 = vector.broadcast %cst_2 : f32 to vector<1x512xf32>
    %7 = arith.addf %6, %5 : vector<1x512xf32>
    %8 = arith.mulf %2, %7 : vector<1x512xf32>
    %c0_3 = arith.constant 0 : index
    %c0_4 = arith.constant 0 : index
    %9 = vector.load %arg2[%c0_3, %c0_4] : memref<1x512xf32, #tpu.memory_space<vmem>>, vector<1x512xf32>
    tpu.vector_store %arg2[%c0_3, %c0_4], %8 {strides = array<i32>} : memref<1x512xf32, #tpu.memory_space<vmem>>, vector<1x512xf32>,
    return
  }
  func.func @transform_0(%arg0: i32) -> (i32, i32) {
    %c0_i32 = arith.constant 0 : i32
    %c0_i32_0 = arith.constant 0 : i32
    return %arg0, %c0_i32 : i32, i32
  }
  func.func @transform_1(%arg0: i32) -> (i32, i32) {
    %c0_i32 = arith.constant 0 : i32
    %c0_i32_0 = arith.constant 0 : i32
    return %arg0, %c0_i32 : i32, i32
  }
}

</mosaic_0001>

<llo_original>
// kernel: tpu_custom_call.1
$region0: #{tpu_custom_call.1}
  #allocation0 [shape = 'u32[]', space=smem, size = 0x4, offset = 0x4, fixed_abs, tag = 'smem constant byte address 0x4 - core index']
  #allocation1 [shape = 'u32[144,128]{1,0:T(1,128)}', space=vmem, size = 0x12000, scoped, tag = 'internal scratch']
  %s0 = inlined_call_operand.hbm [shape: f32[1,512], index: 0, kind: input, shape index: {}]
  %s1 = inlined_call_operand.hbm [shape: f32[1,512], index: 1, kind: output, shape index: {}]
  %s2 = sld [smem:[#allocation0]]
  $region18: #{tpu_custom_call.1} parent=0
    _
  %s4 = ssub.s32 1, %s2
  %s5 = scalar_select 0, %s4, %s2
  $region1: #{tpu_custom_call.1} parent=0
    #allocation2 [shape = 'u8[2048]{0}', space=vmem, size = 0x800, scoped, tag = 'input window, operand 0, single buffered']
    #allocation3 [shape = 's32[1]{0}', space=sflag, size = 0x4, scoped, tag = 'scoped memory for tpu_custom_call.1']
    #allocation4 [shape = 's32[1]{0}', space=sflag, size = 0x4, scoped, tag = 'scoped memory for tpu_custom_call.1']
    #allocation5 [shape = 'u8[2048]{0}', space=vmem, size = 0x800, scoped, tag = 'output window, operand 0, single buffered']
    %6 = vsyncpa [#allocation3], 0
    %7 = vsyncpa [#allocation4], 0
    // Predicated region
    $region2: #{tpu_custom_call.1} parent=1 // pred_check
      _
    $region3: #{tpu_custom_call.1} parent=1 // pred_check_branch
      %9 = sbr.rel (0) target = $region5
    $region4: #{tpu_custom_call.1} parent=1 // pred_region
      %s11 = ssub.s32 64, 64
      %12 = vsyncadd [#allocation3], %s11
      %s14 = sshll.u32 [#allocation2], 4
      %s15 = int_to_ptr.vmem [resolvable:$true] %s14
      %17 = dma.hbm_to_vmem [thread:$0]  %s0, 64, %s15, [#allocation3]
    $region5: #{tpu_custom_call.1} parent=1 // pred_fallthru
      _
    // Predicated region
    $region6: #{tpu_custom_call.1} parent=1 // pred_check
      _
    $region7: #{tpu_custom_call.1} parent=1 // pred_check_branch
      %19 = sbr.rel (0) target = $region9
    $region8: #{tpu_custom_call.1} parent=1 // pred_region
      %20 = dma.done [#allocation3], 64
    $region9: #{tpu_custom_call.1} parent=1 // pred_fallthru
      _
    %v21 = vld [vmem:[#allocation2] sm:$0xf]
    %v22 = vmul.f32 %v21, 0.5
    %v23 = vmul.f32 %v21, 0.70710677
    %v24 = verf.f32.pop %v23
    %v25 = vadd.f32 %v24, 1.0
    %v26 = vmul.f32 %v22, %v25
    %v27 = vlaneseq
    %vm28 = vcmp.ge.s32.totalorder %v27, 0
    %vm29 = vcmp.lt.s32.totalorder %v27, 512
    %vm30 = vmand %vm28, %vm29
    %31 = vst.msk [vmem:[#allocation5] sm:$0xf] %vm30, %v26
    // Predicated region
    $region10: #{tpu_custom_call.1} parent=1 // pred_check
      _
    $region11: #{tpu_custom_call.1} parent=1 // pred_check_branch
      %33 = sbr.rel (0) target = $region13
    $region12: #{tpu_custom_call.1} parent=1 // pred_region
      %s35 = ssub.s32 64, 64
      %36 = vsyncadd [#allocation4], %s35
      %s38 = sshll.u32 [#allocation5], 4
      %s39 = int_to_ptr.vmem [resolvable:$true] %s38
      %41 = dma.vmem_to_hbm [thread:$0]  %s39, 64, %s1, [#allocation4]
    $region13: #{tpu_custom_call.1} parent=1 // pred_fallthru
      _
    // Predicated region
    $region14: #{tpu_custom_call.1} parent=1 // pred_check
      _
    $region15: #{tpu_custom_call.1} parent=1 // pred_check_branch
      %43 = sbr.rel (0) target = $region17
    $region16: #{tpu_custom_call.1} parent=1 // pred_region
      %44 = dma.done [#allocation4], 64
    $region17: #{tpu_custom_call.1} parent=1 // pred_fallthru
      _
    %45 = vsyncpa [#allocation3], 1
    %46 = vsyncpa [#allocation4], 1

</llo_original>
